<compile_context>
chip_gen: v5e
topology: v5e:2x2
jax: 0.10.0
libtpu: 0.0.40
codegen_flags: <defaults>
</compile_context>

<pallas_src>
import numpy as np
import jax
import jax.numpy as jnp
from jax.experimental import pallas as pl
from jax.experimental.pallas import tpu as pltpu

# ---- defaults of GeometricH1Loss.__init__ -----------------------------------
ALPHA = 0.5          # balance of L2 vs H1 seminorms
SQUARED = False
ABSOLUTE = False     # -> forward() uses the relative ("rel") loss
REDUCTION = True
SIZE_AVERAGE = False


# ============================ host-side precompute ============================
def _clenshaw_curtiss_weights(n):
    """Clenshaw-Curtis nodes/weights on [-1, 1] (Waldvogel's algorithm)."""
    tcheb = np.cos(np.linspace(np.pi, 0.0, n))
    if n == 2:
        wcc = np.array([1.0, 1.0])
    else:
        n1 = n - 1
        N = np.arange(1, n1, 2)
        l = len(N)
        m = n1 - l
        v = np.concatenate([2.0 / N / (N - 2), 1.0 / N[-1:], np.zeros(m)])
        v = 0.0 - v[:-1] - v[-1:0:-1]
        g0 = -np.ones(n1)
        g0[l] = g0[l] + n1
        g0[m] = g0[m] + n1
        g = g0 / (n1 ** 2 - 1 + (n1 % 2))
        wcc = np.fft.ifft(v + g).real
        wcc = np.concatenate((wcc, wcc[:1]))
    return tcheb, wcc


def _precompute_legpoly(mmax, lmax, theta, csphase=True):
    """Orthonormal associated Legendre P̄_l^m(cos θ); shape (mmax, lmax, nlat)."""
    nmax = max(mmax, lmax)
    x = np.cos(theta)
    vdm = np.zeros((nmax, nmax, len(theta)), dtype=np.float64)
    vdm[0, 0, :] = 1.0 / np.sqrt(4.0 * np.pi)
    for l in range(1, nmax):
        vdm[l - 1, l, :] = np.sqrt(2 * l + 1) * x * vdm[l - 1, l - 1, :]
        vdm[l, l, :] = np.sqrt((2 * l + 1) * (1 + x) * (1 - x) / (2 * l)) * vdm[l - 1, l - 1, :]
    for l in range(2, nmax):
        for m in range(0, l - 1):
            a = np.sqrt((2 * l - 1) / (l - m) * (2 * l + 1) / (l + m))
            b = np.sqrt((l + m - 1) / (l - m) * (2 * l + 1) / (2 * l - 3) * (l - m - 1) / (l + m))
            vdm[m, l, :] = x * a * vdm[m, l - 1, :] - b * vdm[m, l - 2, :]
    vdm = vdm[:mmax, :lmax]
    if csphase:
        for m in range(1, mmax, 2):
            vdm[m] *= -1.0
    return vdm


def build_sht_operators(nlat, nlon, pad_to=128):
    """Build the merged (quadrature * Legendre * forward-rFFT) operator.

    Returns:
      A    : (nlat*nlon, P) float32, columns = [re | im] spectral components,
             sqrt(m-folding factor) folded in, zero-padded to P (multiple of pad_to).
      w_h1 : (1, P) float32, l*(l+1) per column (both halves), zero in padding.
      W    : (mmax, lmax, nlat) float64 — for the numpy reference.
      h1l  : (lmax,) float64          — for the numpy reference.
    """
    lmax = nlat
    mmax = nlon // 2 + 1
    cost, wq = _clenshaw_curtiss_weights(nlat)
    theta = np.flip(np.arccos(cost))
    pct = _precompute_legpoly(mmax, lmax, theta)            # (mmax, lmax, nlat)
    W = pct * wq[None, None, :]                             # quadrature folded in

    m = np.arange(mmax)
    n = np.arange(nlon)
    ang = 2.0 * np.pi * np.outer(n, m) / nlon               # (nlon, mmax)
    scale = 2.0 * np.pi / nlon                              # 2*pi * rfft(norm="forward")
    dft_re = scale * np.cos(ang)
    dft_im = -scale * np.sin(ang)

    # A[k, n, l, m] = W[m, l, k] * dft[n, m]  ->  (nlat*nlon, lmax*mmax)
    A_re = np.einsum('mlk,nm->knlm', W, dft_re).reshape(nlat * nlon, lmax * mmax)
    A_im = np.einsum('mlk,nm->knlm', W, dft_im).reshape(nlat * nlon, lmax * mmax)

    # Fold the negative-m folding factor (m=0 once, m>0 twice) into the columns.
    mfac = np.where(m == 0, 1.0, 2.0)
    sfac = np.sqrt(np.broadcast_to(mfac[None, :], (lmax, mmax)).reshape(-1))
    A_re = A_re * sfac[None, :]
    A_im = A_im * sfac[None, :]

    LM = lmax * mmax
    P = ((2 * LM + pad_to - 1) // pad_to) * pad_to           # lane-dense padding
    A = np.zeros((nlat * nlon, P), dtype=np.float32)
    A[:, :LM] = A_re
    A[:, LM:2 * LM] = A_im

    h1l = np.arange(lmax, dtype=np.float64)
    h1l = h1l * (h1l + 1.0)
    h1col = np.broadcast_to(h1l[:, None], (lmax, mmax)).reshape(-1)
    w_h1 = np.zeros((1, P), dtype=np.float32)
    w_h1[0, :LM] = h1col
    w_h1[0, LM:2 * LM] = h1col

    return A, w_h1, W, h1l


# ================================ Pallas kernel ===============================
def _h1_partial_kernel(x_ref, a_ref, wh1_ref, l2_ref, h1_ref):
    """One (spectral tile p, batch block nb) step.

    x_ref   : (R, KN)   bf16  stacked [diff ; tar] rows of batch block nb
    a_ref   : (KN, TP)  bf16  spectral tile p of the folded SHT operator
    wh1_ref : (1, TP)   f32   l*(l+1) weights of spectral tile p
    l2_ref  : (NB, R, 1) f32  grid-resident per-row L2 partial sums (output)
    h1_ref  : (NB, R, 1) f32  grid-resident per-row H1 partial sums (output)
    """
    p = pl.program_id(0)      # spectral tile   (outer grid axis)
    nb = pl.program_id(1)     # batch block     (inner grid axis)

    # MXU: bf16 x bf16 with f32 accumulation.
    coeffs = jnp.dot(x_ref[...], a_ref[...],
                     preferred_element_type=jnp.float32)      # (R, TP) f32
    power = coeffs * coeffs                                   # |re|^2 / |im|^2 cols

    # Lane reductions (XLU) — per-row partial sums for this spectral tile.
    l2p = jnp.sum(power, axis=-1, keepdims=True)              # (R, 1)
    h1p = jnp.sum(power * wh1_ref[...], axis=-1, keepdims=True)

    # Accumulate into the grid-resident outputs (constant block index ->
    # single VMEM buffer for the whole grid, written back to HBM once).
    @pl.when(p == 0)
    def _init():
        l2_ref[nb] = l2p
        h1_ref[nb] = h1p

    @pl.when(p > 0)
    def _accumulate():
        l2_ref[nb] = l2_ref[nb] + l2p
        h1_ref[nb] = h1_ref[nb] + h1p


# ================================ host helpers ================================
def _round_up(x, m):
    return -(-x // m) * m


def _vmem_limit_bytes():
    """Generation-aware VMEM budget: ~85% of physical capacity.

    v7x (64 MiB physical) -> ~54 MiB; v5e/v6e (128 MiB) -> ~108 MiB.
    Conservative 64 MiB fallback if the query is unavailable.
    """
    try:
        cap = int(pltpu.get_tpu_info().vmem_capacity_bytes)
    except Exception:
        cap = None
    if not cap or cap <= 0:
        cap = 64 << 20
    return int(min(max(32 << 20, int(cap * 0.85)), 112 << 20))


def _pick_tb(B, C, row_target):
    """Largest divisor TB of B s.t. the stacked LHS has <= row_target rows AND
    NB = B // TB >= 2 (keeps the pipeline busy / leaves room for megacore)."""
    best = 1
    for tb in range(1, B + 1):
        if B % tb:
            continue
        nb = B // tb
        if B >= 2 and nb < 2:
            continue
        if 2 * tb * C <= row_target:
            best = tb
    return best


def _pick_tp(KN, P0, R, vmem_limit):
    """Spectral tile width: multiple of 128 sized so the double-buffered bf16
    operator tile plus the (R, TP) f32 intermediates use <= ~half the budget."""
    per_lane = 2 * (2 * KN) + 3 * (4 * R) + 2 * 4     # bytes per lane of TP
    budget = max(vmem_limit // 2, 8 << 20)
    tp = (budget // per_lane) // 128 * 128
    tp = max(128, int(tp))
    return min(tp, _round_up(P0, 128))


# ================================== wrapper ===================================
def geometric_h1_loss(prd, tar, a_op, w_h1, mask=None, *, tp=None):
    B, C, H, Wd = prd.shape
    KN = H * Wd
    P0 = a_op.shape[1]

    vmem_limit = _vmem_limit_bytes()
    row_target = 512 if vmem_limit >= (96 << 20) else 256      # fill MXU M where VMEM allows
    TB = _pick_tb(B, C, row_target)
    NB = B // TB
    R_half = TB * C
    R_half_pad = _round_up(R_half, 8)          # sublane legality for the x block
    R = 2 * R_half_pad                          # stacked [diff ; tar] rows per block

    if tp is None:
        TP = _pick_tp(KN, P0, R, vmem_limit)
    else:
        TP = max(128, _round_up(int(tp), 128))
    NP = -(-P0 // TP)
    P = NP * TP
    if P != P0:
        a_op = jnp.pad(a_op, ((0, 0), (0, P - P0)))
        w_h1 = jnp.pad(w_h1, ((0, 0), (0, P - P0)))

    # Stacked bf16 LHS, built in the wrapper: subtraction in f32, cast each
    # half to bf16 BEFORE stacking (no f32 concat copies inside the kernel).
    diff = (prd.astype(jnp.float32) - tar.astype(jnp.float32))
    diff = diff.reshape(NB, R_half, KN).astype(jnp.bfloat16)
    tarr = tar.astype(jnp.float32).reshape(NB, R_half, KN).astype(jnp.bfloat16)
    if R_half_pad != R_half:
        zp = jnp.zeros((NB, R_half_pad - R_half, KN), jnp.bfloat16)
        diff = jnp.concatenate([diff, zp], axis=1)
        tarr = jnp.concatenate([tarr, zp], axis=1)
    x = jnp.concatenate([diff, tarr], axis=1).reshape(NB * R, KN)

    grid = (NP, NB)        # spectral axis OUTER -> operator streamed from HBM once
    l2_rows, h1_rows = pl.pallas_call(
        _h1_partial_kernel,
        out_shape=(jax.ShapeDtypeStruct((NB, R, 1), jnp.float32),
                   jax.ShapeDtypeStruct((NB, R, 1), jnp.float32)),
        grid=grid,
        in_specs=[
            pl.BlockSpec((R, KN), lambda p, nb: (nb, 0)),     # stacked inputs
            pl.BlockSpec((KN, TP), lambda p, nb: (0, p)),     # operator tile
            pl.BlockSpec((1, TP), lambda p, nb: (0, p)),      # h1 weights tile
        ],
        out_specs=(
            # Full-array blocks with constant index maps: grid-resident f32
            # accumulators, written back to HBM exactly once at grid end.
            pl.BlockSpec((NB, R, 1), lambda p, nb: (0, 0, 0)),
            pl.BlockSpec((NB, R, 1), lambda p, nb: (0, 0, 0)),
        ),
        compiler_params=pltpu.CompilerParams(
            # Both axes touch the resident accumulators -> must stay "arbitrary".
            dimension_semantics=("arbitrary", "arbitrary"),
            vmem_limit_bytes=vmem_limit,
        ),
    )(x, a_op, w_h1)

    # --- finalize in plain f32 JAX (tiny): channel sums, sqrt, ratio, reduce ---
    def _finish(rows):                                   # (NB, R, 1) -> (NB, 2, TB)
        rows = rows[:, :, 0].reshape(NB, 2, R_half_pad)[:, :, :R_half]
        return rows.reshape(NB, 2, TB, C).sum(axis=-1)

    l2_n2 = _finish(l2_rows)
    h1_n2 = _finish(h1_rows)
    if SQUARED:
        norms = ALPHA * l2_n2 + (1.0 - ALPHA) * h1_n2
    else:
        norms = ALPHA * jnp.sqrt(l2_n2) + (1.0 - ALPHA) * jnp.sqrt(h1_n2)

    diff_norms = norms[:, 0, :].reshape(-1)              # (B,)
    tar_norms = norms[:, 1, :].reshape(-1)

    if ABSOLUTE:
        retval = diff_norms
        if REDUCTION:
            return jnp.mean(retval) if SIZE_AVERAGE else jnp.sum(retval)
        return retval

    retval = diff_norms / tar_norms
    if mask is not None:
        retval = retval * mask
    if REDUCTION:
        if SIZE_AVERAGE:
            if mask is None:
                return jnp.mean(retval)
            return jnp.sum(retval) / jnp.sum(mask)
        return jnp.sum(retval)
    return retval


# ============================== numpy reference ===============================
def reference_loss(prd, tar, W, h1l):
    def sobolev(x):
        nlon = x.shape[-1]
        xh = 2.0 * np.pi * np.fft.rfft(x, axis=-1) / nlon        # norm="forward"
        coeffs = np.einsum('bckm,mlk->bclm', xh, W)
        power = coeffs.real ** 2 + coeffs.imag ** 2
        norm2 = power[..., 0] + 2.0 * power[..., 1:].sum(axis=-1)  # (B, C, L)
        nb = norm2.shape[0]
        l2 = norm2.reshape(nb, -1).sum(axis=-1)
        h1 = (norm2 * h1l).reshape(nb, -1).sum(axis=-1)
        if SQUARED:
            return ALPHA * l2 + (1.0 - ALPHA) * h1
        return ALPHA * np.sqrt(l2) + (1.0 - ALPHA) * np.sqrt(h1)

    dn = sobolev(prd - tar)
    tn = sobolev(tar)
    r = dn if ABSOLUTE else dn / tn
    if REDUCTION:
        return np.mean(r) if SIZE_AVERAGE else np.sum(r)
    return r


# ===================================== main ===================================
if __name__ == "__main__":
    B, C, NLAT, NLON = 2, 4, 8, 16
    key = jax.random.PRNGKey(0)
    k1, k2 = jax.random.split(key)
    prd = jax.random.normal(k1, (B, C, NLAT, NLON), dtype=jnp.float32)
    tar = jax.random.normal(k2, (B, C, NLAT, NLON), dtype=jnp.float32)

    A_np, wh1_np, W_np, h1l_np = build_sht_operators(NLAT, NLON)
    a_op = jnp.asarray(A_np, dtype=jnp.bfloat16)     # bf16 operator: half the HBM/VMEM bytes
    w_h1 = jnp.asarray(wh1_np)

    # tp=128 forces >= 2 spectral tiles at this toy size so the operator-
    # streaming / partial-sum accumulation path is exercised end to end.
    loss = geometric_h1_loss(prd, tar, a_op, w_h1, tp=128)
    loss = jax.block_until_ready(loss)

    ref = reference_loss(np.asarray(prd, np.float64), np.asarray(tar, np.float64),
                         W_np, h1l_np)
    # bf16 operator/inputs (f32 accumulation) cost ~0.1-1% relative accuracy on
    # the norm ratio; tolerance loosened accordingly vs. the float64 FFT reference.
    assert np.allclose(float(loss), float(ref), rtol=3e-2, atol=1e-4), (float(loss), float(ref))
    print("KERNEL_OK")
</pallas_src>

<mosaic_0001>
module attributes {stable_mosaic.version = 11 : i64} {
  func.func @_h1_partial_kernel(%arg0: i32, %arg1: i32, %arg2: memref<16x128xbf16, #tpu.memory_space<vmem>>, %arg3: memref<128x128xbf16, #tpu.memory_space<vmem>>, %arg4: memref<1x128xf32, #tpu.memory_space<vmem>>, %arg5: memref<2x16x1xf32, #tpu.memory_space<vmem>>, %arg6: memref<2x16x1xf32, #tpu.memory_space<vmem>>) attributes {dimension_semantics = [#tpu.dimension_semantics<arbitrary>, #tpu.dimension_semantics<arbitrary>], iteration_bounds = array<i64: 2, 2>, scalar_prefetch = 0 : i64, scratch_operands = 0 : i64, tpu.core_type = #tpu.core_type<tc>, window_params = [{transform_indices = @transform_0, window_bounds = array<i64: 16, 128>}, {transform_indices = @transform_1, window_bounds = array<i64: 128, 128>}, {transform_indices = @transform_2, window_bounds = array<i64: 1, 128>}, {pipeline_mode = #tpu.pipeline_mode<synchronous>, transform_indices = @transform_3, window_bounds = array<i64: 2, 16, 1>}, {pipeline_mode = #tpu.pipeline_mode<synchronous>, transform_indices = @transform_4, window_bounds = array<i64: 2, 16, 1>}]} {
    %c0 = arith.constant 0 : index
    %c0_0 = arith.constant 0 : index
    %0 = vector.load %arg2[%c0, %c0_0] : memref<16x128xbf16, #tpu.memory_space<vmem>>, vector<16x128xbf16>
    %c0_1 = arith.constant 0 : index
    %c0_2 = arith.constant 0 : index
    %1 = vector.load %arg3[%c0_1, %c0_2] : memref<128x128xbf16, #tpu.memory_space<vmem>>, vector<128x128xbf16>
    %cst = arith.constant dense<0.000000e+00> : vector<16x128xf32>
    %2 = tpu.matmul %0, %1, %cst {dimension_numbers = #tpu.dot_dimension_numbers<[1], [0], [0], [1], [0, 0, 1, 1], [], []>} : vector<16x128xbf16>, vector<128x128xbf16>, vector<16x128xf32> -> vector<16x128xf32>
    %3 = arith.mulf %2, %2 : vector<16x128xf32>
    %cst_3 = arith.constant dense<0.000000e+00> : vector<16xf32>
    %4 = vector.multi_reduction <add>, %3, %cst_3 [1] : vector<16x128xf32> to vector<16xf32>
    %5 = vector.shape_cast %4 : vector<16xf32> to vector<16x1xf32>
    %c0_4 = arith.constant 0 : index
    %c0_5 = arith.constant 0 : index
    %6 = vector.load %arg4[%c0_4, %c0_5] : memref<1x128xf32, #tpu.memory_space<vmem>>, vector<1x128xf32>
    %7 = vector.broadcast %6 : vector<1x128xf32> to vector<16x128xf32>
    %8 = arith.mulf %3, %7 : vector<16x128xf32>
    %cst_6 = arith.constant dense<0.000000e+00> : vector<16xf32>
    %9 = vector.multi_reduction <add>, %8, %cst_6 [1] : vector<16x128xf32> to vector<16xf32>
    %10 = vector.shape_cast %9 : vector<16xf32> to vector<16x1xf32>
    %c0_i32 = arith.constant 0 : i32
    %11 = arith.cmpi eq, %arg0, %c0_i32 : i32
    %12 = arith.extui %11 : i1 to i32
    %c0_i32_7 = arith.constant 0 : i32
    %13 = arith.cmpi ne, %12, %c0_i32_7 : i32
    scf.if %13 {
      %17 = arith.index_cast %arg1 : i32 to index
      %c0_10 = arith.constant 0 : index
      %c0_11 = arith.constant 0 : index
      %18 = vector.load %arg5[%17, %c0_10, %c0_11] : memref<2x16x1xf32, #tpu.memory_space<vmem>>, vector<1x16x1xf32>
      %19 = vector.shape_cast %18 : vector<1x16x1xf32> to vector<16x1xf32>
      %20 = vector.shape_cast %5 : vector<16x1xf32> to vector<1x16x1xf32>
      tpu.vector_store %arg5[%17, %c0_10, %c0_11], %20 {strides = array<i32>} : memref<2x16x1xf32, #tpu.memory_space<vmem>>, vector<1x16x1xf32>,
      %21 = arith.index_cast %arg1 : i32 to index
      %c0_12 = arith.constant 0 : index
      %c0_13 = arith.constant 0 : index
      %22 = vector.load %arg6[%21, %c0_12, %c0_13] : memref<2x16x1xf32, #tpu.memory_space<vmem>>, vector<1x16x1xf32>
      %23 = vector.shape_cast %22 : vector<1x16x1xf32> to vector<16x1xf32>
      %24 = vector.shape_cast %10 : vector<16x1xf32> to vector<1x16x1xf32>
      tpu.vector_store %arg6[%21, %c0_12, %c0_13], %24 {strides = array<i32>} : memref<2x16x1xf32, #tpu.memory_space<vmem>>, vector<1x16x1xf32>,
    } else {
    }
    %c0_i32_8 = arith.constant 0 : i32
    %14 = arith.cmpi sgt, %arg0, %c0_i32_8 : i32
    %15 = arith.extui %14 : i1 to i32
    %c0_i32_9 = arith.constant 0 : i32
    %16 = arith.cmpi ne, %15, %c0_i32_9 : i32
    scf.if %16 {
      %17 = arith.index_cast %arg1 : i32 to index
      %c0_10 = arith.constant 0 : index
      %c0_11 = arith.constant 0 : index
      %18 = vector.load %arg5[%17, %c0_10, %c0_11] : memref<2x16x1xf32, #tpu.memory_space<vmem>>, vector<1x16x1xf32>
      %19 = vector.shape_cast %18 : vector<1x16x1xf32> to vector<16x1xf32>
      %20 = arith.addf %19, %5 : vector<16x1xf32>
      %21 = arith.index_cast %arg1 : i32 to index
      %c0_12 = arith.constant 0 : index
      %c0_13 = arith.constant 0 : index
      %22 = vector.load %arg5[%21, %c0_12, %c0_13] : memref<2x16x1xf32, #tpu.memory_space<vmem>>, vector<1x16x1xf32>
      %23 = vector.shape_cast %22 : vector<1x16x1xf32> to vector<16x1xf32>
      %24 = vector.shape_cast %20 : vector<16x1xf32> to vector<1x16x1xf32>
      tpu.vector_store %arg5[%21, %c0_12, %c0_13], %24 {strides = array<i32>} : memref<2x16x1xf32, #tpu.memory_space<vmem>>, vector<1x16x1xf32>,
      %25 = arith.index_cast %arg1 : i32 to index
      %c0_14 = arith.constant 0 : index
      %c0_15 = arith.constant 0 : index
      %26 = vector.load %arg6[%25, %c0_14, %c0_15] : memref<2x16x1xf32, #tpu.memory_space<vmem>>, vector<1x16x1xf32>
      %27 = vector.shape_cast %26 : vector<1x16x1xf32> to vector<16x1xf32>
      %28 = arith.addf %27, %10 : vector<16x1xf32>
      %29 = arith.index_cast %arg1 : i32 to index
      %c0_16 = arith.constant 0 : index
      %c0_17 = arith.constant 0 : index
      %30 = vector.load %arg6[%29, %c0_16, %c0_17] : memref<2x16x1xf32, #tpu.memory_space<vmem>>, vector<1x16x1xf32>
      %31 = vector.shape_cast %30 : vector<1x16x1xf32> to vector<16x1xf32>
      %32 = vector.shape_cast %28 : vector<16x1xf32> to vector<1x16x1xf32>
      tpu.vector_store %arg6[%29, %c0_16, %c0_17], %32 {strides = array<i32>} : memref<2x16x1xf32, #tpu.memory_space<vmem>>, vector<1x16x1xf32>,
    } else {
    }
    return
  }
  func.func @transform_0(%arg0: i32, %arg1: i32) -> (i32, i32) {
    %c0_i32 = arith.constant 0 : i32
    %c0_i32_0 = arith.constant 0 : i32
    return %arg1, %c0_i32 : i32, i32
  }
  func.func @transform_1(%arg0: i32, %arg1: i32) -> (i32, i32) {
    %c0_i32 = arith.constant 0 : i32
    %c0_i32_0 = arith.constant 0 : i32
    return %c0_i32, %arg0 : i32, i32
  }
  func.func @transform_2(%arg0: i32, %arg1: i32) -> (i32, i32) {
    %c0_i32 = arith.constant 0 : i32
    %c0_i32_0 = arith.constant 0 : i32
    return %c0_i32, %arg0 : i32, i32
  }
  func.func @transform_3(%arg0: i32, %arg1: i32) -> (i32, i32, i32) {
    %c0_i32 = arith.constant 0 : i32
    %c0_i32_0 = arith.constant 0 : i32
    %c0_i32_1 = arith.constant 0 : i32
    %c0_i32_2 = arith.constant 0 : i32
    return %c0_i32, %c0_i32_0, %c0_i32_1 : i32, i32, i32
  }
  func.func @transform_4(%arg0: i32, %arg1: i32) -> (i32, i32, i32) {
    %c0_i32 = arith.constant 0 : i32
    %c0_i32_0 = arith.constant 0 : i32
    %c0_i32_1 = arith.constant 0 : i32
    %c0_i32_2 = arith.constant 0 : i32
    return %c0_i32, %c0_i32_0, %c0_i32_1 : i32, i32, i32
  }
}

</mosaic_0001>

<llo_original>
// kernel: tpu_custom_call.1
$region0: #{tpu_custom_call.1}
  #allocation0 [shape = 'u32[]', space=smem, size = 0x4, offset = 0x4, fixed_abs, tag = 'smem constant byte address 0x4 - core index']
  #allocation1 [shape = 'u32[72,128]{1,0:T(1,128)}', space=vmem, size = 0x9000, scoped, tag = 'internal scratch']
  %s0 = inlined_call_operand.hbm [shape: bf16[32,128], index: 0, kind: input, shape index: {}]
  %s1 = inlined_call_operand.hbm [shape: bf16[128,256], index: 1, kind: input, shape index: {}]
  %s2 = inlined_call_operand.hbm [shape: f32[1,256], index: 2, kind: input, shape index: {}]
  %s3 = inlined_call_operand.vmem [shape: f32[2,16,1], index: 3, kind: output, shape index: {0}]
  %s4 = inlined_call_operand.vmem [shape: f32[2,16,1], index: 4, kind: output, shape index: {1}]
  %5 = xla_tuple %s3, %s4
  %s6 = sld [smem:[#allocation0]]
  $region73: #{tpu_custom_call.1} parent=0
    _
  %s8 = ssub.s32 1, %s6
  %s9 = scalar_select 0, %s8, %s6
  $region1: #{tpu_custom_call.1} parent=0
    #allocation2 [shape = 'u8[8192]{0}', space=vmem, size = 0x2000, scoped, tag = 'input window, operand 0']
    #allocation3 [shape = 's32[2]{0}', space=sflag, size = 0x8, scoped, tag = 'scoped memory for tpu_custom_call.1']
    #allocation4 [shape = 'u8[65536]{0}', space=vmem, size = 0x10000, scoped, tag = 'input window, operand 1']
    #allocation5 [shape = 's32[2]{0}', space=sflag, size = 0x8, scoped, tag = 'scoped memory for tpu_custom_call.1']
    #allocation6 [shape = 'u8[1024]{0}', space=vmem, size = 0x400, scoped, tag = 'input window, operand 2']
    %10 = vsyncpa [#allocation3], 0
    %s11 = scalar_lea.sflag [#allocation3], 1
    %12 = vsyncpa %s11, 0
    %13 = vsyncpa [#allocation5], 0
    %s14 = scalar_lea.sflag [#allocation5], 1
    %15 = vsyncpa %s14, 0
    loop: start=0, step=1, limit=6
    $region2: #{tpu_custom_call.1} parent=1 // loop_pre_header
      _
    $region3: #{tpu_custom_call.1} parent=1 // loop_header
      %s17 = sphi 0, %s21
      %p18 = scmp.ge.s32.totalorder %s17, 6
      %s24 = sphi 0, %s36
      %s25 = sphi 0, %s32
      %s26 = sphi 0, %s24
      %s27 = sphi 0, %s25
      %s28 = sphi 0, %s26
      %s29 = sphi 0, %s27
      %s39 = sphi 0, %s41
      %s42 = sphi 0, %s39
      %s43 = sphi 0, %s42
      %s59 = sphi 0, %s43
      %s65 = sphi 0, %s67
      %s68 = sphi 0, %s65
      %s69 = sphi 0, %s68
      %s85 = sphi 0, %s69
      %s91 = sphi 0, %s93
      %s94 = sphi 0, %s91
      %s95 = sphi 0, %s94
      %s111 = sphi 0, %s95
      %s115 = sphi 0, %s115
      %s117 = sphi 0, %s115
      %s118 = sphi 0, %s117
      %s132 = sphi 0, %s118
      %s136 = sphi 0, %s136
      %s138 = sphi 0, %s136
      %s139 = sphi 0, %s138
      %s153 = sphi 0, %s139
    $region4: #{tpu_custom_call.1} parent=1 // loop_header_branch
      %20 = sbr.rel (%p18) target = $region8
    $region5: #{tpu_custom_call.1} parent=1 // loop_body
      %s22 = ssub.s32 %s17, 1
      %s23 = ssub.s32 %s17, 2
      %s30 = sadd.s32 1, %s25
      %p31 = scmp.ge.s32.totalorder %s30, 2
      %s32 = scalar_select %p31, 0, %s30
      %s33 = sadd.s32 1, %s24
      %s34 = scalar_select %p31, %s33, %s24
      %p35 = scmp.ge.s32.totalorder %s34, 2
      %s36 = scalar_select %p35, 0, %s34
      %s37 = ssub.s32 %s25, %s32
      %p38 = scmp.eq.s32.totalorder %s37, 0
      %s40 = sadd.s32 %s39, 1
      %s41 = scalar_select %p38, %s39, %s40
      %p44 = pneg %p38
      %p45 = scmp.eq.s32.totalorder %s17, 3
      %p46 = por %p44, %p45
      %p47 = scmp.ne.s32.totalorder %s39, %s42
      %p48 = scmp.eq.s32.totalorder %s17, 0
      %p49 = por %p47, %p48
      %p50 = scmp.ne.s32.totalorder %s39, %s42
      %p51 = scmp.eq.s32.totalorder %s22, 3
      %p52 = por %p50, %p51
      %p53 = scmp.ne.s32.totalorder %s42, %s43
      %p54 = scmp.eq.s32.totalorder %s22, 0
      %p55 = por %p53, %p54
      %p56 = scmp.ne.s32.totalorder %s42, %s43
      %p57 = scmp.eq.s32.totalorder %s23, 3
      %p58 = por %p56, %p57
      %p60 = scmp.ne.s32.totalorder %s43, %s59
      %p61 = scmp.eq.s32.totalorder %s23, 0
      %p62 = por %p60, %p61
      %s63 = ssub.s32 %s24, %s36
      %p64 = scmp.eq.s32.totalorder %s63, 0
      %s66 = sadd.s32 %s65, 1
      %s67 = scalar_select %p64, %s65, %s66
      %p70 = pneg %p64
      %p71 = scmp.eq.s32.totalorder %s17, 3
      %p72 = por %p70, %p71
      %p73 = scmp.ne.s32.totalorder %s65, %s68
      %p74 = scmp.eq.s32.totalorder %s17, 0
      %p75 = por %p73, %p74
      %p76 = scmp.ne.s32.totalorder %s65, %s68
      %p77 = scmp.eq.s32.totalorder %s22, 3
      %p78 = por %p76, %p77
      %p79 = scmp.ne.s32.totalorder %s68, %s69
      %p80 = scmp.eq.s32.totalorder %s22, 0
      %p81 = por %p79, %p80
      %p82 = scmp.ne.s32.totalorder %s68, %s69
      %p83 = scmp.eq.s32.totalorder %s23, 3
      %p84 = por %p82, %p83
      %p86 = scmp.ne.s32.totalorder %s69, %s85
      %p87 = scmp.eq.s32.totalorder %s23, 0
      %p88 = por %p86, %p87
      %s89 = ssub.s32 %s24, %s36
      %p90 = scmp.eq.s32.totalorder %s89, 0
      %s92 = sadd.s32 %s91, 1
      %s93 = scalar_select %p90, %s91, %s92
      %p96 = pneg %p90
      %p97 = scmp.eq.s32.totalorder %s17, 3
      %p98 = por %p96, %p97
      %p99 = scmp.ne.s32.totalorder %s91, %s94
      %p100 = scmp.eq.s32.totalorder %s17, 0
      %p101 = por %p99, %p100
      %p102 = scmp.ne.s32.totalorder %s91, %s94
      %p103 = scmp.eq.s32.totalorder %s22, 3
      %p104 = por %p102, %p103
      %p105 = scmp.ne.s32.totalorder %s94, %s95
      %p106 = scmp.eq.s32.totalorder %s22, 0
      %p107 = por %p105, %p106
      %p108 = scmp.ne.s32.totalorder %s94, %s95
      %p109 = scmp.eq.s32.totalorder %s23, 3
      %p110 = por %p108, %p109
      %p112 = scmp.ne.s32.totalorder %s95, %s111
      %p113 = scmp.eq.s32.totalorder %s23, 0
      %p114 = por %p112, %p113
      %s116 = sadd.s32 %s115, 1
      %p119 = scmp.eq.s32.totalorder %s17, 3
      %p120 = scmp.ne.s32.totalorder %s115, %s117
      %p121 = scmp.eq.s32.totalorder %s17, 0
      %p122 = por %p120, %p121
      %p123 = scmp.ne.s32.totalorder %s115, %s117
      %p124 = scmp.eq.s32.totalorder %s22, 3
      %p125 = por %p123, %p124
      %p126 = scmp.ne.s32.totalorder %s117, %s118
      %p127 = scmp.eq.s32.totalorder %s22, 0
      %p128 = por %p126, %p127
      %p129 = scmp.ne.s32.totalorder %s117, %s118
      %p130 = scmp.eq.s32.totalorder %s23, 3
      %p131 = por %p129, %p130
      %p133 = scmp.ne.s32.totalorder %s118, %s132
      %p134 = scmp.eq.s32.totalorder %s23, 0
      %p135 = por %p133, %p134
      %s137 = sadd.s32 %s136, 1
      %p140 = scmp.eq.s32.totalorder %s17, 3
      %p141 = scmp.ne.s32.totalorder %s136, %s138
      %p142 = scmp.eq.s32.totalorder %s17, 0
      %p143 = por %p141, %p142
      %p144 = scmp.ne.s32.totalorder %s136, %s138
      %p145 = scmp.eq.s32.totalorder %s22, 3
      %p146 = por %p144, %p145
      %p147 = scmp.ne.s32.totalorder %s138, %s139
      %p148 = scmp.eq.s32.totalorder %s22, 0
      %p149 = por %p147, %p148
      %p150 = scmp.ne.s32.totalorder %s138, %s139
      %p151 = scmp.eq.s32.totalorder %s23, 3
      %p152 = por %p150, %p151
      %p154 = scmp.ne.s32.totalorder %s139, %s153
      %p155 = scmp.eq.s32.totalorder %s23, 0
      %p156 = por %p154, %p155
      %p157 = scmp.le.s32.totalorder 1, %s17
      %p158 = scmp.lt.s32.totalorder %s17, 5
      %p159 = pnand %p157, %p158
      %p160 = pneg %p159
      // Predicated region
      $region9: #{tpu_custom_call.1} parent=5 // pred_check
        _
      $region10: #{tpu_custom_call.1} parent=5 // pred_check_branch
        %162 = sbr.rel (%p159) target = $region12
      $region11: #{tpu_custom_call.1} parent=5 // pred_region
        %s163 = ssub.s32 %s17, 1
      $region12: #{tpu_custom_call.1} parent=5 // pred_fallthru
        _
      %p164 = scmp.lt.s32.totalorder %s17, 4
      // Predicated region
      $region13: #{tpu_custom_call.1} parent=5 // pred_check
        %p165 = pneg %p164
      $region14: #{tpu_custom_call.1} parent=5 // pred_check_branch
        %167 = sbr.rel (%p165) target = $region16
      $region15: #{tpu_custom_call.1} parent=5 // pred_region
        // Predicated region
        $region17: #{tpu_custom_call.1} parent=15 // pred_check
          %p168 = pneg %p49
        $region18: #{tpu_custom_call.1} parent=15 // pred_check_branch
          %170 = sbr.rel (%p168) target = $region20
        $region19: #{tpu_custom_call.1} parent=15 // pred_region
          %s171 = sand.u32 %s39, 1
          %s172 = scalar_lea.sflag [#allocation3], %s171
          %s173 = sand.u32 %s39, 1
          %s174 = smul.addr %s173, 8
          %s175 = scalar_lea.vmem [#allocation2], %s174
          %s176 = smul.u32 2, %s25
          %178 = vsyncadd %s172, 0
          %s179 = smul.addr %s176, 4
          %s180 = scalar_lea.hbm %s0, %s179
          %s181 = sshll.u32 %s180, 4
          %s182 = int_to_ptr.hbm [resolvable:$true] %s181
          %s183 = sshll.u32 %s175, 4
          %s184 = int_to_ptr.vmem [resolvable:$true] %s183
          %189 = dma.hbm_to_vmem [thread:$0]  %s182, 128, %s184, %s172, 64, 64, 4
        $region20: #{tpu_custom_call.1} parent=15 // pred_fallthru
          _
        // Predicated region
        $region21: #{tpu_custom_call.1} parent=15 // pred_check
          %p190 = pneg %p75
        $region22: #{tpu_custom_call.1} parent=15 // pred_check_branch
          %192 = sbr.rel (%p190) target = $region24
        $region23: #{tpu_custom_call.1} parent=15 // pred_region
          %s193 = sand.u32 %s17, 1
          %s194 = scalar_lea.sflag [#allocation5], %s193
          %s195 = sand.u32 %s65, 1
          %s196 = smul.addr %s195, 64
          %s197 = scalar_lea.vmem [#allocation4], %s196
          %199 = vsyncadd %s194, 0
          %s200 = smul.addr %s24, 4
          %s201 = scalar_lea.hbm %s1, %s200
          %s202 = sshll.u32 %s201, 4
          %s203 = int_to_ptr.hbm [resolvable:$true] %s202
          %s204 = sshll.u32 %s197, 4
          %s205 = int_to_ptr.vmem [resolvable:$true] %s204
          %210 = dma.hbm_to_vmem [thread:$0]  %s203, 1024, %s205, %s194, 128, 64, 4
        $region24: #{tpu_custom_call.1} parent=15 // pred_fallthru
          _
        // Predicated region
        $region25: #{tpu_custom_call.1} parent=15 // pred_check
          %p211 = pneg %p101
        $region26: #{tpu_custom_call.1} parent=15 // pred_check_branch
          %213 = sbr.rel (%p211) target = $region28
        $region27: #{tpu_custom_call.1} parent=15 // pred_region
          %s214 = sand.u32 %s17, 1
          %s215 = scalar_lea.sflag [#allocation5], %s214
          %s216 = sand.u32 %s91, 1
          %s217 = scalar_lea.vmem [#allocation6], %s216
          %219 = vsyncadd %s215, 0
          %s220 = scalar_lea.hbm %s2, %s24
          %s222 = sshll.u32 %s220, 4
          %s223 = int_to_ptr.hbm [resolvable:$true] %s222
          %s224 = sshll.u32 %s217, 4
          %s225 = int_to_ptr.vmem [resolvable:$true] %s224
          %227 = dma.hbm_to_vmem [thread:$0]  %s223, 16, %s225, %s215
        $region28: #{tpu_custom_call.1} parent=15 // pred_fallthru
          _
      $region16: #{tpu_custom_call.1} parent=5 // pred_fallthru
        _
      %p228 = scmp.le.s32.totalorder 1, %s17
      %p229 = scmp.lt.s32.totalorder %s17, 5
      %p230 = pnand %p228, %p229
      %p231 = pneg %p230
      // Predicated region
      $region29: #{tpu_custom_call.1} parent=5 // pred_check
        _
      $region30: #{tpu_custom_call.1} parent=5 // pred_check_branch
        %233 = sbr.rel (%p230) target = $region32
      $region31: #{tpu_custom_call.1} parent=5 // pred_region
        %s234 = ssub.s32 %s17, 1
        %s235 = sand.u32 %s42, 1
        %s236 = scalar_lea.sflag [#allocation3], %s235
        %s237 = sand.u32 %s42, 1
        %s238 = smul.addr %s237, 8
        %s239 = scalar_lea.vmem [#allocation2], %s238
        // Predicated region
        $region33: #{tpu_custom_call.1} parent=31 // pred_check
          %p240 = pneg %p55
        $region34: #{tpu_custom_call.1} parent=31 // pred_check_branch
          %242 = sbr.rel (%p240) target = $region36
        $region35: #{tpu_custom_call.1} parent=31 // pred_region
          %244 = dma.done %s236, 128
        $region36: #{tpu_custom_call.1} parent=31 // pred_fallthru
          _
        %s245 = sand.u32 %s22, 1
        %s246 = scalar_lea.sflag [#allocation5], %s245
        %s247 = sand.u32 %s68, 1
        %s248 = smul.addr %s247, 64
        %s249 = scalar_lea.vmem [#allocation4], %s248
        // Predicated region
        $region37: #{tpu_custom_call.1} parent=31 // pred_check
          %p250 = pneg %p81
        $region38: #{tpu_custom_call.1} parent=31 // pred_check_branch
          %252 = sbr.rel (%p250) target = $region40
        $region39: #{tpu_custom_call.1} parent=31 // pred_region
          %254 = dma.done %s246, 1024
        $region40: #{tpu_custom_call.1} parent=31 // pred_fallthru
          _
        %s255 = sand.u32 %s22, 1
        %s256 = scalar_lea.sflag [#allocation5], %s255
        %s257 = sand.u32 %s94, 1
        %s258 = scalar_lea.vmem [#allocation6], %s257
        // Predicated region
        $region41: #{tpu_custom_call.1} parent=31 // pred_check
          %p259 = pneg %p107
        $region42: #{tpu_custom_call.1} parent=31 // pred_check_branch
          %261 = sbr.rel (%p259) target = $region44
        $region43: #{tpu_custom_call.1} parent=31 // pred_region
          %263 = dma.done %s256, 16
        $region44: #{tpu_custom_call.1} parent=31 // pred_fallthru
          _
        %s264 = sand.u32 %s42, 1
        %s265 = scalar_lea.sflag [#allocation3], %s264
        %s266 = sand.u32 %s42, 1
        %s267 = smul.addr %s266, 8
        %s268 = scalar_lea.vmem [#allocation2], %s267
        %p269 = pneg %p55
        %p270 = pneg %p52
        %s271 = sand.u32 %s22, 1
        %s272 = scalar_lea.sflag [#allocation5], %s271
        %s273 = sand.u32 %s68, 1
        %s274 = smul.addr %s273, 64
        %s275 = scalar_lea.vmem [#allocation4], %s274
        %p276 = pneg %p81
        %p277 = pneg %p78
        %s278 = sand.u32 %s22, 1
        %s279 = scalar_lea.sflag [#allocation5], %s278
        %s280 = sand.u32 %s94, 1
        %s281 = scalar_lea.vmem [#allocation6], %s280
        %p282 = pneg %p107
        %p283 = pneg %p104
        %p284 = pneg %p128
        %p285 = pneg %p125
        %p286 = pneg %p149
        %p287 = pneg %p146
        %s288 = smul.u32 2, %s27
        %v289 = vld [vmem:[%s239] sm:$0xf]
        %v290 = vld [vmem:[%s239 + $0x4] sm:$0xf]
        %v291 = vld [vmem:[%s249] sm:$0xf]
        %v292 = vld [vmem:[%s249 + $0x4] sm:$0xf]
        %v293 = vld [vmem:[%s249 + $0x8] sm:$0xf]
        %v294 = vld [vmem:[%s249 + $0xc] sm:$0xf]
        %v295 = vld [vmem:[%s249 + $0x10] sm:$0xf]
        %v296 = vld [vmem:[%s249 + $0x14] sm:$0xf]
        %v297 = vld [vmem:[%s249 + $0x18] sm:$0xf]
        %v298 = vld [vmem:[%s249 + $0x1c] sm:$0xf]
        %v299 = vld [vmem:[%s249 + $0x20] sm:$0xf]
        %v300 = vld [vmem:[%s249 + $0x24] sm:$0xf]
        %v301 = vld [vmem:[%s249 + $0x28] sm:$0xf]
        %v302 = vld [vmem:[%s249 + $0x2c] sm:$0xf]
        %v303 = vld [vmem:[%s249 + $0x30] sm:$0xf]
        %v304 = vld [vmem:[%s249 + $0x34] sm:$0xf]
        %v305 = vld [vmem:[%s249 + $0x38] sm:$0xf]
        %v306 = vld [vmem:[%s249 + $0x3c] sm:$0xf]
        %v309 = vunpack.c.l.b16 %v289
        %v310 = vunpack.c.l.b16 %v290
        %v311 = vpack.c.b16 %v310, %v309
        %v329 = vunpack.c.l.b16 %v291
        %v330 = vunpack.c.l.b16 %v292
        %v331 = vunpack.c.l.b16 %v293
        %v332 = vunpack.c.l.b16 %v294
        %v333 = vunpack.c.l.b16 %v295
        %v334 = vunpack.c.l.b16 %v296
        %v335 = vunpack.c.l.b16 %v297
        %v336 = vunpack.c.l.b16 %v298
        %v337 = vunpack.c.l.b16 %v299
        %v338 = vunpack.c.l.b16 %v300
        %v339 = vunpack.c.l.b16 %v301
        %v340 = vunpack.c.l.b16 %v302
        %v341 = vunpack.c.l.b16 %v303
        %v342 = vunpack.c.l.b16 %v304
        %v343 = vunpack.c.l.b16 %v305
        %v344 = vunpack.c.l.b16 %v306
        %v345 = vpack.c.b16 %v330, %v329
        %v346 = vpack.c.b16 %v332, %v331
        %v347 = vpack.c.b16 %v334, %v333
        %v348 = vpack.c.b16 %v336, %v335
        %v349 = vpack.c.b16 %v338, %v337
        %v350 = vpack.c.b16 %v340, %v339
        %v351 = vpack.c.b16 %v342, %v341
        %v352 = vpack.c.b16 %v344, %v343
        %361 = vmatpush.bf16.msra.mxu0 %v352
        %362 = vmatpush.bf16.msra.mxu0 %v351
        %363 = vmatpush.bf16.msra.mxu0 %v350
        %364 = vmatpush.bf16.msra.mxu0 %v349
        %365 = vmatpush.bf16.msra.mxu0 %v348
        %366 = vmatpush.bf16.msra.mxu0 %v347
        %367 = vmatpush.bf16.msra.mxu0 %v346
        %368 = vmatpush.bf16.msra.mxu0 %v345
        %369 = vmatmul.bf16.gmra.mxu0 %v311
        %v370 = vpop.f32.mrf.mxu0
        %v371 = vadd.f32 0.0, %v370
        %v372 = vpop.f32.mrf.mxu0
        %v373 = vadd.f32 0.0, %v372
        %374 = vdwg.mxu0
        %v375 = vmul.f32 %v371, %v371
        %v376 = vmul.f32 %v373, %v373
        %377 = vadd.xlane.f32.xlu0 %v375
        %v378 = vpop.xlane.xlu0 %377
        %379 = vadd.xlane.f32.xlu0 %v376
        %v380 = vpop.xlane.xlu0 %379
        %v381 = vld [vmem:[%s258] sm:$0x1]
        %v383 = vperm.slane %v381, 0
        %v385 = vmul.f32 %v375, %v383
        %v386 = vmul.f32 %v376, %v383
        %387 = vadd.xlane.f32.xlu0 %v385
        %v388 = vpop.xlane.xlu0 %387
        %389 = vadd.xlane.f32.xlu0 %v386
        %v390 = vpop.xlane.xlu0 %389
        %p391 = scmp.eq.s32.totalorder %s26, 0
        // Predicated region
        $region45: #{tpu_custom_call.1} parent=31 // pred_check
          %p392 = pneg %p391
        $region46: #{tpu_custom_call.1} parent=31 // pred_check_branch
          %394 = sbr.rel (%p392) target = $region48
        $region47: #{tpu_custom_call.1} parent=31 // pred_region
          %s395 = smul.u32 %s27, 16
          %s396 = scalar_lea.vmem %s3, %s395
          %vm397 = vcmask 7168
          %398 = vst.msk [vmem:[%s396] sm:$0xff] %vm397, %v378
          %399 = vst.msk [vmem:[%s396 + $0x8] sm:$0xff] %vm397, %v380
          %s400 = scalar_lea.vmem %s4, %s395
          %401 = vst.msk [vmem:[%s400] sm:$0xff] %vm397, %v388
          %402 = vst.msk [vmem:[%s400 + $0x8] sm:$0xff] %vm397, %v390
        $region48: #{tpu_custom_call.1} parent=31 // pred_fallthru
          _
        %p403 = scmp.gt.s32.totalorder %s26, 0
        // Predicated region
        $region49: #{tpu_custom_call.1} parent=31 // pred_check
          %p404 = pneg %p403
        $region50: #{tpu_custom_call.1} parent=31 // pred_check_branch
          %406 = sbr.rel (%p404) target = $region52
        $region51: #{tpu_custom_call.1} parent=31 // pred_region
          %s407 = smul.u32 %s27, 16
          %s408 = scalar_lea.vmem %s3, %s407
          %v409 = vld [vmem:[%s408] sm:$0xff]
          %v410 = vld [vmem:[%s408 + $0x8] sm:$0xff]
          %v411 = vadd.f32 %v409, %v378
          %v412 = vadd.f32 %v410, %v380
          %vm413 = vcmask 7168
          %414 = vst.msk [vmem:[%s408] sm:$0xff] %vm413, %v411
          %415 = vst.msk [vmem:[%s408 + $0x8] sm:$0xff] %vm413, %v412
          %s416 = scalar_lea.vmem %s4, %s407
          %v417 = vld [vmem:[%s416] sm:$0xff]
          %v418 = vld [vmem:[%s416 + $0x8] sm:$0xff]
          %v419 = vadd.f32 %v417, %v388
          %v420 = vadd.f32 %v418, %v390
          %421 = vst.msk [vmem:[%s416] sm:$0xff] %vm413, %v419
          %422 = vst.msk [vmem:[%s416 + $0x8] sm:$0xff] %vm413, %v420
        $region52: #{tpu_custom_call.1} parent=31 // pred_fallthru
          _
        // Predicated region
        $region53: #{tpu_custom_call.1} parent=31 // pred_check
          %p423 = pneg %p125
        $region54: #{tpu_custom_call.1} parent=31 // pred_check_branch
          %425 = sbr.rel (%p423) target = $region56
        $region55: #{tpu_custom_call.1} parent=31 // pred_region
          _
        $region56: #{tpu_custom_call.1} parent=31 // pred_fallthru
          _
        // Predicated region
        $region57: #{tpu_custom_call.1} parent=31 // pred_check
          %p426 = pneg %p146
        $region58: #{tpu_custom_call.1} parent=31 // pred_check_branch
          %428 = sbr.rel (%p426) target = $region60
        $region59: #{tpu_custom_call.1} parent=31 // pred_region
          _
        $region60: #{tpu_custom_call.1} parent=31 // pred_fallthru
          _
        // Predicated region
        $region61: #{tpu_custom_call.1} parent=31 // pred_check
          %p429 = pneg %p125
        $region62: #{tpu_custom_call.1} parent=31 // pred_check_branch
          %431 = sbr.rel (%p429) target = $region64
        $region63: #{tpu_custom_call.1} parent=31 // pred_region
          _
        $region64: #{tpu_custom_call.1} parent=31 // pred_fallthru
          _
        // Predicated region
        $region65: #{tpu_custom_call.1} parent=31 // pred_check
          %p432 = pneg %p146
        $region66: #{tpu_custom_call.1} parent=31 // pred_check_branch
          %434 = sbr.rel (%p432) target = $region68
        $region67: #{tpu_custom_call.1} parent=31 // pred_region
          _
        $region68: #{tpu_custom_call.1} parent=31 // pred_fallthru
          _
      $region32: #{tpu_custom_call.1} parent=5 // pred_fallthru
        _
      %p435 = scmp.le.s32.totalorder 2, %s17
      // Predicated region
      $region69: #{tpu_custom_call.1} parent=5 // pred_check
        %p436 = pneg %p435
      $region70: #{tpu_custom_call.1} parent=5 // pred_check_branch
        %438 = sbr.rel (%p436) target = $region72
      $region71: #{tpu_custom_call.1} parent=5 // pred_region
        %s439 = ssub.s32 %s17, 2
      $region72: #{tpu_custom_call.1} parent=5 // pred_fallthru
        _
    $region6: #{tpu_custom_call.1} parent=1 // loop_footer
      %s21 = sadd.s32 1, %s17
    $region7: #{tpu_custom_call.1} parent=1 // loop_footer_branch
      %16 = sbr.rel target = $region3
    $region8: #{tpu_custom_call.1} parent=1 // loop_exit
      _
    %440 = vsyncpa [#allocation3], 1
    %s441 = scalar_lea.sflag [#allocation3], 1
    %442 = vsyncpa %s441, 1
    %443 = vsyncpa [#allocation5], 1
    %s444 = scalar_lea.sflag [#allocation5], 1
    %445 = vsyncpa %s444, 1

</llo_original>
